<compile_context>
chip_gen: v7x
topology: tpu7x:2x2x1
jax: 0.10.0
libtpu: 0.0.40
codegen_flags: <defaults>
</compile_context>

<pallas_src>
import numpy as np
import jax
import jax.numpy as jnp
from jax.experimental import pallas as pl
from jax.experimental.pallas import tpu as pltpu


def _round_up(x, m):
    return ((x + m - 1) // m) * m


_VMEM_BUDGET = 20 * 1024 * 1024       # conservative working-set budget (bytes)
_VMEM_LIMIT = 32 * 1024 * 1024        # explicit scoped-VMEM request (safe on v5e/v6e/v7x)


# ----------------------------------------------------------------------------
# Kernels
# ----------------------------------------------------------------------------
def _dense_cf_kernel(x_ref, w_ref, b_ref, o_ref):
    """Channels-first (3-D path): out(Cout,TL) = relu(W(Cout,Cin)@x(Cin,TL) + b)."""
    x = x_ref[...].astype(jnp.bfloat16)                 # in-kernel cast (x is f32 in HBM)
    acc = jnp.dot(w_ref[...], x, preferred_element_type=jnp.float32)
    o_ref[...] = jnp.maximum(acc + b_ref[...], 0.0).astype(o_ref.dtype)


def _dense_cl_kernel(x_ref, wt_ref, b_ref, o_ref):
    """Channels-last (2-D path): out(TM,Cout) = relu(x(TM,Cin)@Wt(Cin,Cout) + b)."""
    x = x_ref[...].astype(jnp.bfloat16)
    acc = jnp.dot(x, wt_ref[...], preferred_element_type=jnp.float32)
    o_ref[...] = jnp.maximum(acc + b_ref[...], 0.0).astype(o_ref.dtype)


# ----------------------------------------------------------------------------
# Tile selection (VMEM-budgeted; tiles up to 1024 per review)
# ----------------------------------------------------------------------------
def _choose_col_tile(L, Cin, Cout, out_isz):
    """Lane-tile over L for the channels-first kernel."""
    per_col = 2 * (Cin * 4 + Cout * out_isz)            # double-buffered x + out per column
    resident = 2 * Cin * Cout * 2 + 2 * Cout * 4        # weight (bf16) + bias buffers
    avail = max(_VMEM_BUDGET - resident, 128 * per_col)
    cap = max(128, min(1024, (avail // per_col) // 128 * 128))
    if L <= cap:
        return L, L                                     # full extent: block == array dim
    return cap, _round_up(L, cap)


def _choose_row_tile(N, Cin, Cout, out_isz):
    """Row-tile over N for the channels-last kernel (multiple of 256 for the MXU)."""
    per_row = 2 * (Cin * 4 + Cout * out_isz)
    resident = 2 * Cin * Cout * 2 + 2 * Cout * 4
    avail = max(_VMEM_BUDGET - resident, 256 * per_row)
    cap = max(256, min(1024, (avail // per_row) // 256 * 256))
    if N <= cap:
        return N, N
    return cap, _round_up(N, cap)


# ----------------------------------------------------------------------------
# Wrappers
# ----------------------------------------------------------------------------
def _dense_3d(x, w_scaled, bias, out_dtype):
    N, Cin, L = x.shape
    Cout = w_scaled.shape[0]
    out_isz = jnp.dtype(out_dtype).itemsize

    TL, L_pad = _choose_col_tile(L, Cin, Cout, out_isz)
    if L_pad != L:
        x = jnp.pad(x, ((0, 0), (0, 0), (0, L_pad - L)))

    w = w_scaled.astype(jnp.bfloat16)                   # (Cout, Cin), tiny one-time cast
    b = bias.reshape(Cout, 1)

    grid = (N, L_pad // TL)
    cost = pl.CostEstimate(
        flops=2 * N * L_pad * Cin * Cout,
        transcendentals=0,
        bytes_accessed=N * Cin * L_pad * 4 + Cin * Cout * 2 + N * Cout * L_pad * out_isz,
    )

    out = pl.pallas_call(
        _dense_cf_kernel,
        out_shape=jax.ShapeDtypeStruct((N, Cout, L_pad), out_dtype),
        grid_spec=pltpu.PrefetchScalarGridSpec(
            num_scalar_prefetch=0,
            grid=grid,
            in_specs=[
                pl.BlockSpec((None, Cin, TL), lambda n, l: (n, 0, l)),  # activations
                pl.BlockSpec((Cout, Cin), lambda n, l: (0, 0)),         # folded weight (resident)
                pl.BlockSpec((Cout, 1), lambda n, l: (0, 0)),           # folded BN bias (resident)
            ],
            out_specs=pl.BlockSpec((None, Cout, TL), lambda n, l: (n, 0, l)),
        ),
        compiler_params=pltpu.CompilerParams(
            dimension_semantics=("parallel", "parallel"),
            vmem_limit_bytes=_VMEM_LIMIT,
        ),
        cost_estimate=cost,
    )(x, w, b)

    if L_pad != L:
        out = out[:, :, :L]
    return out


def _dense_2d(x, w_scaled, bias, out_dtype):
    N, Cin = x.shape
    Cout = w_scaled.shape[0]
    out_isz = jnp.dtype(out_dtype).itemsize

    TM, N_pad = _choose_row_tile(N, Cin, Cout, out_isz)
    if N_pad != N:
        x = jnp.pad(x, ((0, N_pad - N), (0, 0)))

    wt = w_scaled.T.astype(jnp.bfloat16)                # (Cin, Cout), tiny
    b = bias.reshape(1, Cout)

    grid = (N_pad // TM,)
    cost = pl.CostEstimate(
        flops=2 * N_pad * Cin * Cout,
        transcendentals=0,
        bytes_accessed=N_pad * Cin * 4 + Cin * Cout * 2 + N_pad * Cout * out_isz,
    )

    out = pl.pallas_call(
        _dense_cl_kernel,
        out_shape=jax.ShapeDtypeStruct((N_pad, Cout), out_dtype),
        grid_spec=pltpu.PrefetchScalarGridSpec(
            num_scalar_prefetch=0,
            grid=grid,
            in_specs=[
                pl.BlockSpec((TM, Cin), lambda i: (i, 0)),      # activation rows
                pl.BlockSpec((Cin, Cout), lambda i: (0, 0)),    # folded weight (resident)
                pl.BlockSpec((1, Cout), lambda i: (0, 0)),      # folded BN bias (resident)
            ],
            out_specs=pl.BlockSpec((TM, Cout), lambda i: (i, 0)),
        ),
        compiler_params=pltpu.CompilerParams(
            dimension_semantics=("parallel",),
            vmem_limit_bytes=_VMEM_LIMIT,
        ),
        cost_estimate=cost,
    )(x, wt, b)

    if N_pad != N:
        out = out[:N]
    return out


def dense_layer(x, weight, bn, eps=1e-5, out_dtype=jnp.bfloat16):
    """Fused DenseLayer forward (eval-mode BN folded into scale/bias).

    x:      (N, Cin) or (N, Cin, L)        (same convention as the PyTorch module)
    weight: (Cout, Cin, 1) or (Cout, Cin)  (Conv1d kernel-size 1, bias=False)
    bn:     (gamma, beta, running_mean, running_var) of BatchNorm1d(Cout)
    out_dtype: bf16 by default (halves HBM writeback; epilogue math stays f32).
    """
    if weight.ndim == 3:
        weight = weight[:, :, 0]
    Cout = weight.shape[0]

    gamma, beta, mean, var = bn
    scale = (gamma / jnp.sqrt(var + eps)).astype(jnp.float32)
    bias = (beta - mean * scale).astype(jnp.float32)
    # Fold BN scale into the weight in f32 (single bf16 cast happens later).
    w_scaled = weight.astype(jnp.float32) * scale[:, None]

    if x.ndim == 2:
        return _dense_2d(x, w_scaled, bias, out_dtype)       # (N,Cin) -> (N,Cout)
    return _dense_3d(x, w_scaled, bias, out_dtype)           # (N,Cin,L) -> (N,Cout,L)


# ----------------------------------------------------------------------------
# Pure-JAX reference and self-test
# ----------------------------------------------------------------------------
def _ref_forward(x, weight, bn, eps=1e-5):
    """Conv1d(k=1, no bias) -> BatchNorm1d(eval) -> ReLU in f32."""
    squeeze = (x.ndim == 2)
    if squeeze:
        x = x[:, :, None]
    w2 = weight[:, :, 0] if weight.ndim == 3 else weight
    y = jnp.einsum("oc,ncl->nol", w2, x)
    gamma, beta, mean, var = bn
    sh = (1, -1, 1)
    y = ((y - mean.reshape(sh)) / jnp.sqrt(var.reshape(sh) + eps)
         * gamma.reshape(sh) + beta.reshape(sh))
    y = jax.nn.relu(y)
    if squeeze:
        y = y[:, :, 0]
    return y


if __name__ == "__main__":
    N, Cin, L, Cout = 2, 16, 8, 32

    key = jax.random.PRNGKey(0)
    k = jax.random.split(key, 7)

    weight = 0.1 * jax.random.normal(k[0], (Cout, Cin, 1), jnp.float32)
    gamma = 1.0 + 0.1 * jax.random.normal(k[1], (Cout,), jnp.float32)
    beta = 0.1 * jax.random.normal(k[2], (Cout,), jnp.float32)
    mean = 0.1 * jax.random.normal(k[3], (Cout,), jnp.float32)
    var = 0.5 + jax.random.uniform(k[4], (Cout,), jnp.float32)
    bn = (gamma, beta, mean, var)

    x3 = jax.random.normal(k[5], (N, Cin, L), jnp.float32)   # 3-D path (N, C, L)
    x2 = jax.random.normal(k[6], (N, Cin), jnp.float32)      # 2-D path (N, C)

    out3 = jax.block_until_ready(dense_layer(x3, weight, bn))
    ref3 = jax.block_until_ready(_ref_forward(x3, weight, bn))
    out2 = jax.block_until_ready(dense_layer(x2, weight, bn))
    ref2 = jax.block_until_ready(_ref_forward(x2, weight, bn))

    assert out3.shape == ref3.shape, (out3.shape, ref3.shape)
    assert out2.shape == ref2.shape, (out2.shape, ref2.shape)
    # bf16 MXU inputs / bf16 output writeback => expect ~1e-2-level error vs f32 ref.
    for name, o, r in (("3d", out3, ref3), ("2d", out2, ref2)):
        o_np = np.asarray(jnp.asarray(o, jnp.float32))
        r_np = np.asarray(r)
        diff = float(np.max(np.abs(o_np - r_np)))
        if not np.allclose(o_np, r_np, atol=2e-2, rtol=2e-2):
            raise AssertionError(f"{name} mismatch vs reference, max abs diff = {diff}")
    print("KERNEL_OK")
</pallas_src>

<mosaic_0001>
module attributes {stable_mosaic.version = 11 : i64} {
  func.func @_dense_cf_kernel(%arg0: i32, %arg1: i32, %arg2: memref<1x16x8xf32, #tpu.memory_space<vmem>>, %arg3: memref<32x16xbf16, #tpu.memory_space<vmem>>, %arg4: memref<32x1xf32, #tpu.memory_space<vmem>>, %arg5: memref<1x32x8xbf16, #tpu.memory_space<vmem>>) attributes {dimension_semantics = [#tpu.dimension_semantics<parallel>, #tpu.dimension_semantics<parallel>], iteration_bounds = array<i64: 2, 1>, scalar_prefetch = 0 : i64, scratch_operands = 0 : i64, tpu.core_type = #tpu.core_type<tc>, window_params = [{transform_indices = @transform_0, window_bounds = array<i64: 1, 16, 8>}, {pipeline_mode = #tpu.pipeline_mode<synchronous>, transform_indices = @transform_1, window_bounds = array<i64: 32, 16>}, {pipeline_mode = #tpu.pipeline_mode<synchronous>, transform_indices = @transform_2, window_bounds = array<i64: 32, 1>}, {transform_indices = @transform_3, window_bounds = array<i64: 1, 32, 8>}]} {
    %c0 = arith.constant 0 : index
    %c0_0 = arith.constant 0 : index
    %c0_1 = arith.constant 0 : index
    %0 = vector.load %arg2[%c0, %c0_0, %c0_1] : memref<1x16x8xf32, #tpu.memory_space<vmem>>, vector<1x16x8xf32>
    %1 = vector.shape_cast %0 : vector<1x16x8xf32> to vector<16x8xf32>
    %2 = arith.truncf %1 : vector<16x8xf32> to vector<16x8xbf16>
    %c0_2 = arith.constant 0 : index
    %c0_3 = arith.constant 0 : index
    %3 = vector.load %arg3[%c0_2, %c0_3] : memref<32x16xbf16, #tpu.memory_space<vmem>>, vector<32x16xbf16>
    %cst = arith.constant dense<0.000000e+00> : vector<32x8xf32>
    %4 = tpu.matmul %3, %2, %cst {dimension_numbers = #tpu.dot_dimension_numbers<[1], [0], [0], [1], [0, 0, 1, 1], [], []>} : vector<32x16xbf16>, vector<16x8xbf16>, vector<32x8xf32> -> vector<32x8xf32>
    %c0_4 = arith.constant 0 : index
    %c0_5 = arith.constant 0 : index
    %5 = vector.load %arg4[%c0_4, %c0_5] : memref<32x1xf32, #tpu.memory_space<vmem>>, vector<32x1xf32>
    %6 = vector.broadcast %5 : vector<32x1xf32> to vector<32x8xf32>
    %7 = arith.addf %4, %6 : vector<32x8xf32>
    %cst_6 = arith.constant 0.000000e+00 : f32
    %8 = vector.broadcast %cst_6 : f32 to vector<32x8xf32>
    %9 = arith.maximumf %7, %8 : vector<32x8xf32>
    %10 = arith.truncf %9 : vector<32x8xf32> to vector<32x8xbf16>
    %c0_7 = arith.constant 0 : index
    %c0_8 = arith.constant 0 : index
    %c0_9 = arith.constant 0 : index
    %11 = vector.load %arg5[%c0_7, %c0_8, %c0_9] : memref<1x32x8xbf16, #tpu.memory_space<vmem>>, vector<1x32x8xbf16>
    %12 = vector.shape_cast %11 : vector<1x32x8xbf16> to vector<32x8xbf16>
    %13 = vector.shape_cast %10 : vector<32x8xbf16> to vector<1x32x8xbf16>
    tpu.vector_store %arg5[%c0_7, %c0_8, %c0_9], %13 {strides = array<i32>} : memref<1x32x8xbf16, #tpu.memory_space<vmem>>, vector<1x32x8xbf16>,
    return
  }
  func.func @transform_0(%arg0: i32, %arg1: i32) -> (i32, i32, i32) {
    %c0_i32 = arith.constant 0 : i32
    %c0_i32_0 = arith.constant 0 : i32
    return %arg0, %c0_i32, %arg1 : i32, i32, i32
  }
  func.func @transform_1(%arg0: i32, %arg1: i32) -> (i32, i32) {
    %c0_i32 = arith.constant 0 : i32
    %c0_i32_0 = arith.constant 0 : i32
    %c0_i32_1 = arith.constant 0 : i32
    return %c0_i32, %c0_i32_0 : i32, i32
  }
  func.func @transform_2(%arg0: i32, %arg1: i32) -> (i32, i32) {
    %c0_i32 = arith.constant 0 : i32
    %c0_i32_0 = arith.constant 0 : i32
    %c0_i32_1 = arith.constant 0 : i32
    return %c0_i32, %c0_i32_0 : i32, i32
  }
  func.func @transform_3(%arg0: i32, %arg1: i32) -> (i32, i32, i32) {
    %c0_i32 = arith.constant 0 : i32
    %c0_i32_0 = arith.constant 0 : i32
    return %arg0, %c0_i32, %arg1 : i32, i32, i32
  }
}

</mosaic_0001>

<llo_original>
// kernel: tpu_custom_call.1
$region0: #{tpu_custom_call.1}
  #allocation0 [shape = 'u32[]', space=smem, size = 0x4, offset = 0x4, fixed_abs, tag = 'smem constant byte address 0x4 - core index']
  #allocation1 [shape = 'u32[144,128]{1,0:T(1,128)}', space=vmem, size = 0x12000, scoped, tag = 'internal scratch']
  %s0 = inlined_call_operand.vmem [shape: f32[2,16,8], index: 0, kind: input, shape index: {}]
  %s1 = inlined_call_operand.vmem [shape: bf16[32,16], index: 1, kind: input, shape index: {}]
  %s2 = inlined_call_operand.vmem [shape: f32[32,1], index: 2, kind: input, shape index: {}]
  %s3 = inlined_call_operand.vmem [shape: bf16[2,32,8], index: 3, kind: output, shape index: {}]
  %s4 = sld [smem:[#allocation0]]
  $region45: #{tpu_custom_call.1} parent=0
    _
  %s6 = ssub.s32 1, %s4
  %s7 = scalar_select 0, %s6, %s4
  loop: start=0, step=1, limit=4
  $region2: #{tpu_custom_call.1} parent=0 // loop_pre_header
    _
  $region3: #{tpu_custom_call.1} parent=0 // loop_header
    %s9 = sphi 0, %s13
    %p10 = scmp.ge.s32.totalorder %s9, 4
    %s16 = sphi 0, %s28
    %s17 = sphi 0, %s24
    %s18 = sphi 0, %s16
    %s19 = sphi 0, %s17
    %s20 = sphi 0, %s18
    %s21 = sphi 0, %s19
    %s33 = sphi 0, %s35
    %s36 = sphi 0, %s33
    %s37 = sphi 0, %s36
    %s53 = sphi 0, %s37
    %s57 = sphi 0, %s57
    %s59 = sphi 0, %s57
    %s60 = sphi 0, %s59
    %s74 = sphi 0, %s60
    %s78 = sphi 0, %s78
    %s80 = sphi 0, %s78
    %s81 = sphi 0, %s80
    %s95 = sphi 0, %s81
    %s103 = sphi 0, %s105
    %s106 = sphi 0, %s103
    %s107 = sphi 0, %s106
    %s123 = sphi 0, %s107
  $region4: #{tpu_custom_call.1} parent=0 // loop_header_branch
    %12 = sbr.rel (%p10) target = $region8
  $region5: #{tpu_custom_call.1} parent=0 // loop_body
    %s14 = ssub.s32 %s9, 1
    %s15 = ssub.s32 %s9, 2
    %s22 = sadd.s32 1, %s17
    %p23 = scmp.ge.s32.totalorder %s22, 1
    %s24 = scalar_select %p23, 0, %s22
    %s25 = sadd.s32 1, %s16
    %s26 = scalar_select %p23, %s25, %s16
    %p27 = scmp.ge.s32.totalorder %s26, 2
    %s28 = scalar_select %p27, 0, %s26
    %s29 = ssub.s32 %s16, %s28
    %s30 = ssub.s32 %s17, %s24
    %s31 = sor.u32 %s29, %s30
    %p32 = scmp.eq.s32.totalorder %s31, 0
    %s34 = sadd.s32 %s33, 1
    %s35 = scalar_select %p32, %s33, %s34
    %p38 = pneg %p32
    %p39 = scmp.eq.s32.totalorder %s9, 1
    %p40 = por %p38, %p39
    %p41 = scmp.ne.s32.totalorder %s33, %s36
    %p42 = scmp.eq.s32.totalorder %s9, 0
    %p43 = por %p41, %p42
    %p44 = scmp.ne.s32.totalorder %s33, %s36
    %p45 = scmp.eq.s32.totalorder %s14, 1
    %p46 = por %p44, %p45
    %p47 = scmp.ne.s32.totalorder %s36, %s37
    %p48 = scmp.eq.s32.totalorder %s14, 0
    %p49 = por %p47, %p48
    %p50 = scmp.ne.s32.totalorder %s36, %s37
    %p51 = scmp.eq.s32.totalorder %s15, 1
    %p52 = por %p50, %p51
    %p54 = scmp.ne.s32.totalorder %s37, %s53
    %p55 = scmp.eq.s32.totalorder %s15, 0
    %p56 = por %p54, %p55
    %s58 = sadd.s32 %s57, 1
    %p61 = scmp.eq.s32.totalorder %s9, 1
    %p62 = scmp.ne.s32.totalorder %s57, %s59
    %p63 = scmp.eq.s32.totalorder %s9, 0
    %p64 = por %p62, %p63
    %p65 = scmp.ne.s32.totalorder %s57, %s59
    %p66 = scmp.eq.s32.totalorder %s14, 1
    %p67 = por %p65, %p66
    %p68 = scmp.ne.s32.totalorder %s59, %s60
    %p69 = scmp.eq.s32.totalorder %s14, 0
    %p70 = por %p68, %p69
    %p71 = scmp.ne.s32.totalorder %s59, %s60
    %p72 = scmp.eq.s32.totalorder %s15, 1
    %p73 = por %p71, %p72
    %p75 = scmp.ne.s32.totalorder %s60, %s74
    %p76 = scmp.eq.s32.totalorder %s15, 0
    %p77 = por %p75, %p76
    %s79 = sadd.s32 %s78, 1
    %p82 = scmp.eq.s32.totalorder %s9, 1
    %p83 = scmp.ne.s32.totalorder %s78, %s80
    %p84 = scmp.eq.s32.totalorder %s9, 0
    %p85 = por %p83, %p84
    %p86 = scmp.ne.s32.totalorder %s78, %s80
    %p87 = scmp.eq.s32.totalorder %s14, 1
    %p88 = por %p86, %p87
    %p89 = scmp.ne.s32.totalorder %s80, %s81
    %p90 = scmp.eq.s32.totalorder %s14, 0
    %p91 = por %p89, %p90
    %p92 = scmp.ne.s32.totalorder %s80, %s81
    %p93 = scmp.eq.s32.totalorder %s15, 1
    %p94 = por %p92, %p93
    %p96 = scmp.ne.s32.totalorder %s81, %s95
    %p97 = scmp.eq.s32.totalorder %s15, 0
    %p98 = por %p96, %p97
    %s99 = ssub.s32 %s16, %s28
    %s100 = ssub.s32 %s17, %s24
    %s101 = sor.u32 %s99, %s100
    %p102 = scmp.eq.s32.totalorder %s101, 0
    %s104 = sadd.s32 %s103, 1
    %s105 = scalar_select %p102, %s103, %s104
    %p108 = pneg %p102
    %p109 = scmp.eq.s32.totalorder %s9, 1
    %p110 = por %p108, %p109
    %p111 = scmp.ne.s32.totalorder %s103, %s106
    %p112 = scmp.eq.s32.totalorder %s9, 0
    %p113 = por %p111, %p112
    %p114 = scmp.ne.s32.totalorder %s103, %s106
    %p115 = scmp.eq.s32.totalorder %s14, 1
    %p116 = por %p114, %p115
    %p117 = scmp.ne.s32.totalorder %s106, %s107
    %p118 = scmp.eq.s32.totalorder %s14, 0
    %p119 = por %p117, %p118
    %p120 = scmp.ne.s32.totalorder %s106, %s107
    %p121 = scmp.eq.s32.totalorder %s15, 1
    %p122 = por %p120, %p121
    %p124 = scmp.ne.s32.totalorder %s107, %s123
    %p125 = scmp.eq.s32.totalorder %s15, 0
    %p126 = por %p124, %p125
    %p127 = scmp.le.s32.totalorder 1, %s9
    %p128 = scmp.lt.s32.totalorder %s9, 3
    %p129 = pnand %p127, %p128
    %p130 = pneg %p129
    // Predicated region
    $region9: #{tpu_custom_call.1} parent=5 // pred_check
      _
    $region10: #{tpu_custom_call.1} parent=5 // pred_check_branch
      %132 = sbr.rel (%p129) target = $region12
    $region11: #{tpu_custom_call.1} parent=5 // pred_region
      %s133 = ssub.s32 %s9, 1
      // Predicated region
      $region13: #{tpu_custom_call.1} parent=11 // pred_check
        %p134 = pneg %p70
      $region14: #{tpu_custom_call.1} parent=11 // pred_check_branch
        %136 = sbr.rel (%p134) target = $region16
      $region15: #{tpu_custom_call.1} parent=11 // pred_region
        _
      $region16: #{tpu_custom_call.1} parent=11 // pred_fallthru
        _
      // Predicated region
      $region17: #{tpu_custom_call.1} parent=11 // pred_check
        %p137 = pneg %p91
      $region18: #{tpu_custom_call.1} parent=11 // pred_check_branch
        %139 = sbr.rel (%p137) target = $region20
      $region19: #{tpu_custom_call.1} parent=11 // pred_region
        _
      $region20: #{tpu_custom_call.1} parent=11 // pred_fallthru
        _
    $region12: #{tpu_custom_call.1} parent=5 // pred_fallthru
      _
    %p140 = scmp.lt.s32.totalorder %s9, 2
    // Predicated region
    $region21: #{tpu_custom_call.1} parent=5 // pred_check
      %p141 = pneg %p140
    $region22: #{tpu_custom_call.1} parent=5 // pred_check_branch
      %143 = sbr.rel (%p141) target = $region24
    $region23: #{tpu_custom_call.1} parent=5 // pred_region
      // Predicated region
      $region25: #{tpu_custom_call.1} parent=23 // pred_check
        %p144 = pneg %p43
      $region26: #{tpu_custom_call.1} parent=23 // pred_check_branch
        %146 = sbr.rel (%p144) target = $region28
      $region27: #{tpu_custom_call.1} parent=23 // pred_region
        %p147 = scmp.lt.s32.totalorder %s16, 1
        %s148 = scalar_select %p147, %s16, 1
        %p149 = scmp.lt.s32.totalorder %s17, 0
        %s150 = scalar_select %p149, %s17, 0
        %s151 = smul.addr %s148, 2
        %s152 = sadd.s32 %s150, %s151
        %s153 = smul.addr %s152, 8
        %s154 = scalar_lea.vmem %s0, %s153
      $region28: #{tpu_custom_call.1} parent=23 // pred_fallthru
        _
    $region24: #{tpu_custom_call.1} parent=5 // pred_fallthru
      _
    %p155 = scmp.le.s32.totalorder 1, %s9
    %p156 = scmp.lt.s32.totalorder %s9, 3
    %p157 = pnand %p155, %p156
    %p158 = pneg %p157
    // Predicated region
    $region29: #{tpu_custom_call.1} parent=5 // pred_check
      _
    $region30: #{tpu_custom_call.1} parent=5 // pred_check_branch
      %160 = sbr.rel (%p157) target = $region32
    $region31: #{tpu_custom_call.1} parent=5 // pred_region
      %s161 = ssub.s32 %s9, 1
      %p162 = scmp.lt.s32.totalorder %s18, 1
      %s163 = scalar_select %p162, %s18, 1
      %p164 = scmp.lt.s32.totalorder %s19, 0
      %s165 = scalar_select %p164, %s19, 0
      %s166 = smul.addr %s163, 2
      %s167 = sadd.s32 %s165, %s166
      %s168 = smul.addr %s167, 8
      %s169 = scalar_lea.vmem %s0, %s168
      %p170 = pneg %p49
      %p171 = pneg %p46
      %p172 = pneg %p70
      %p173 = pneg %p67
      %p174 = pneg %p91
      %p175 = pneg %p88
      %p176 = pneg %p119
      %p177 = pneg %p116
      %p178 = scmp.lt.s32.totalorder %s18, 1
      %s179 = scalar_select %p178, %s18, 1
      %p180 = scmp.lt.s32.totalorder %s19, 0
      %s181 = scalar_select %p180, %s19, 0
      %s182 = smul.addr %s179, 4
      %s183 = sadd.s32 %s181, %s182
      %s184 = smul.addr %s183, 4
      %s185 = scalar_lea.vmem %s3, %s184
      %p186 = scmp.lt.s32.totalorder %s18, 1
      %s187 = scalar_select %p186, %s18, 1
      %p188 = scmp.lt.s32.totalorder %s19, 0
      %s189 = scalar_select %p188, %s19, 0
      %s190 = smul.addr %s187, 2
      %s191 = sadd.s32 %s189, %s190
      %s192 = smul.addr %s191, 8
      %s193 = scalar_lea.vmem %s0, %s192
      %p194 = scmp.lt.s32.totalorder %s18, 1
      %s195 = scalar_select %p194, %s18, 1
      %p196 = scmp.lt.s32.totalorder %s19, 0
      %s197 = scalar_select %p196, %s19, 0
      %s198 = smul.addr %s195, 4
      %s199 = sadd.s32 %s197, %s198
      %s200 = smul.addr %s199, 4
      %s201 = scalar_lea.vmem %s3, %s200
      %v203 = vld [vmem:[%s193] sm:$0xff]
      %v204 = vld [vmem:[%s193 + $0x8] sm:$0xff]
      %v205 = vpack.c.bf16 %v204, %v203
      %v206 = vld [vmem:[%s1] sm:$0xf]
      %v207 = vld [vmem:[%s1 + $0x4] sm:$0xf]
      %v208 = vld [vmem:[%s1 + $0x8] sm:$0xf]
      %v209 = vld [vmem:[%s1 + $0xc] sm:$0xf]
      %v210 = vld [vmem:[%s2] sm:$0xff]
      %v211 = vld [vmem:[%s2 + $0x8] sm:$0xff]
      %v212 = vld [vmem:[%s2 + $0x10] sm:$0xff]
      %v213 = vld [vmem:[%s2 + $0x18] sm:$0xff]
      %215 = vset.pattern.permute.xlu0 0
      %216 = vperm.xlu0 %215, %v210
      %v217 = vpop.permute.xlu0 %216
      %220 = vset.pattern.permute.xlu0 0
      %221 = vperm.xlu0 %220, %v211
      %v222 = vpop.permute.xlu0 %221
      %225 = vset.pattern.permute.xlu0 0
      %226 = vperm.xlu0 %225, %v212
      %v227 = vpop.permute.xlu0 %226
      %230 = vset.pattern.permute.xlu0 0
      %231 = vperm.xlu0 %230, %v213
      %v232 = vpop.permute.xlu0 %231
      %v238 = vunpack.c.l.b16 %v206
      %v239 = vunpack.c.l.b16 %v207
      %v240 = vunpack.c.l.b16 %v208
      %v241 = vunpack.c.l.b16 %v209
      %v242 = vpack.c.b16 %v239, %v238
      %v243 = vpack.c.b16 %v241, %v240
      %vm244 = vcmask 130048
      %v246 = vsel %vm244, %v242, 0
      %v249 = vsel %vm244, %v243, 0
      %251 = vmatprep.subr.bf16.mxu0 0
      %252 = vmatpush1.bf16.msra.mxu0 %v205
      %253 = vmatprep.subr.bf16.mxu0 0
      %254 = vmatpush1.bf16.msra.mxu0 0
      %255 = vmatprep.subr.bf16.mxu0 0
      %256 = vmatpush1.bf16.msra.mxu0 0
      %257 = vmatprep.subr.bf16.mxu0 0
      %258 = vmatpush1.bf16.msra.mxu0 0
      %259 = vmatprep.subr.bf16.mxu0 0
      %260 = vmatpush1.bf16.msra.mxu0 0
      %261 = vmatprep.subr.bf16.mxu0 0
      %262 = vmatpush1.bf16.msra.mxu0 0
      %263 = vmatprep.subr.bf16.mxu0 0
      %264 = vmatpush1.bf16.msra.mxu0 0
      %265 = vmatprep.subr.bf16.mxu0 0
      %266 = vmatpush1.bf16.msra.mxu0 0
      %267 = vmatprep.subr.bf16.mxu0 0
      %268 = vmatpush1.bf16.msra.mxu0 0
      %269 = vmatprep.subr.bf16.mxu0 0
      %270 = vmatpush1.bf16.msra.mxu0 0
      %271 = vmatprep.subr.bf16.mxu0 0
      %272 = vmatpush1.bf16.msra.mxu0 0
      %273 = vmatprep.subr.bf16.mxu0 0
      %274 = vmatpush1.bf16.msra.mxu0 0
      %275 = vmatprep.subr.bf16.mxu0 0
      %276 = vmatpush1.bf16.msra.mxu0 0
      %277 = vmatprep.subr.bf16.mxu0 0
      %278 = vmatpush1.bf16.msra.mxu0 0
      %279 = vmatprep.subr.bf16.mxu0 0
      %280 = vmatpush1.bf16.msra.mxu0 0
      %281 = vmatprep.subr.bf16.mxu0 0
      %282 = vmatpush1.bf16.msra.mxu0 0
      %283 = vmatprep.mubr.bf16.mxu0 0
      %284 = vmatmul.mubr.bf16.gmra.mrb[0].mxu0 %v246
      %v285 = vpop.f32.mrb[0].mxu0
      %v286 = vadd.f32 %v217, %v285
      %v287 = vpop.f32.mrb[0].mxu0
      %v288 = vpop.f32.mrb[0].mxu0
      %v289 = vadd.f32 %v222, %v288
      %v290 = vpop.f32.mrb[0].mxu0
      %291 = vmatprep.mubr.bf16.mxu0 0
      %292 = vmatmul.mubr.bf16.gmra.mrb[0].mxu0 %v249
      %v293 = vpop.f32.mrb[0].mxu0
      %v294 = vadd.f32 %v227, %v293
      %v295 = vpop.f32.mrb[0].mxu0
      %v296 = vpop.f32.mrb[0].mxu0
      %v297 = vadd.f32 %v232, %v296
      %v298 = vpop.f32.mrb[0].mxu0
      %299 = vdwg.mxu0
      %v300 = vmax.f32 %v286, 0.0
      %v301 = vmax.f32 %v289, 0.0
      %v302 = vmax.f32 %v294, 0.0
      %v303 = vmax.f32 %v297, 0.0
      %v304 = vpack.c.bf16 %v301, %v300
      %v305 = vpack.c.bf16 %v303, %v302
      %v308 = vunpack.c.l.b16 %v304
      %v309 = vunpack.c.h.b16 %v304
      %v310 = vunpack.c.l.b16 %v305
      %v311 = vunpack.c.h.b16 %v305
      %v312 = vpack.c.b16 %v308, %v308
      %v313 = vpack.c.b16 %v309, %v309
      %v314 = vpack.c.b16 %v310, %v310
      %v315 = vpack.c.b16 %v311, %v311
      %vm320 = vcmask 60416
      %321 = vst.msk [vmem:[%s201] sm:$0xf] %vm320, %v312
      %322 = vst.msk [vmem:[%s201 + $0x4] sm:$0xf] %vm320, %v313
      %323 = vst.msk [vmem:[%s201 + $0x8] sm:$0xf] %vm320, %v314
      %324 = vst.msk [vmem:[%s201 + $0xc] sm:$0xf] %vm320, %v315
      %p325 = scmp.lt.s32.totalorder %s18, 1
      %s326 = scalar_select %p325, %s18, 1
      %p327 = scmp.lt.s32.totalorder %s19, 0
      %s328 = scalar_select %p327, %s19, 0
      %s329 = smul.addr %s326, 4
      %s330 = sadd.s32 %s328, %s329
      %s331 = smul.addr %s330, 4
      %s332 = scalar_lea.vmem %s3, %s331
      // Predicated region
      $region33: #{tpu_custom_call.1} parent=31 // pred_check
        %p333 = pneg %p116
      $region34: #{tpu_custom_call.1} parent=31 // pred_check_branch
        %335 = sbr.rel (%p333) target = $region36
      $region35: #{tpu_custom_call.1} parent=31 // pred_region
        _
      $region36: #{tpu_custom_call.1} parent=31 // pred_fallthru
        _
    $region32: #{tpu_custom_call.1} parent=5 // pred_fallthru
      _
    %p336 = scmp.le.s32.totalorder 2, %s9
    // Predicated region
    $region37: #{tpu_custom_call.1} parent=5 // pred_check
      %p337 = pneg %p336
    $region38: #{tpu_custom_call.1} parent=5 // pred_check_branch
      %339 = sbr.rel (%p337) target = $region40
    $region39: #{tpu_custom_call.1} parent=5 // pred_region
      %s340 = ssub.s32 %s9, 2
      // Predicated region
      $region41: #{tpu_custom_call.1} parent=39 // pred_check
        %p341 = pneg %p122
      $region42: #{tpu_custom_call.1} parent=39 // pred_check_branch
        %343 = sbr.rel (%p341) target = $region44
      $region43: #{tpu_custom_call.1} parent=39 // pred_region
        %p344 = scmp.lt.s32.totalorder %s20, 1
        %s345 = scalar_select %p344, %s20, 1
        %p346 = scmp.lt.s32.totalorder %s21, 0
        %s347 = scalar_select %p346, %s21, 0
        %s348 = smul.addr %s345, 4
        %s349 = sadd.s32 %s347, %s348
        %s350 = smul.addr %s349, 4
        %s351 = scalar_lea.vmem %s3, %s350
      $region44: #{tpu_custom_call.1} parent=39 // pred_fallthru
        _
    $region40: #{tpu_custom_call.1} parent=5 // pred_fallthru
      _
  $region6: #{tpu_custom_call.1} parent=0 // loop_footer
    %s13 = sadd.s32 1, %s9
  $region7: #{tpu_custom_call.1} parent=0 // loop_footer_branch
    %8 = sbr.rel target = $region3
  $region8: #{tpu_custom_call.1} parent=0 // loop_exit
    _

</llo_original>
